<compile_context>
chip_gen: v7x
topology: tpu7x:2x2x1
jax: 0.10.0
libtpu: 0.0.40
codegen_flags: <defaults>
</compile_context>

<pallas_src>
import functools

import jax
import jax.numpy as jnp
from jax import lax
from jax.experimental import pallas as pl
from jax.experimental.pallas import tpu as pltpu

LANE = 128          # vreg lane width
TILE_B_MAX = 512    # batch-tile rows (>=512 recovers ~85% of HBM roofline)


def _round_up(x, m):
    return ((x + m - 1) // m) * m


def _pad2(x, rows, cols, dtype=None):
    r, c = x.shape
    y = jnp.pad(x, ((0, rows - r), (0, cols - c)))
    return y.astype(dtype) if dtype is not None else y


# --------------------------------------------------------------------------- #
# Kernel
# --------------------------------------------------------------------------- #
def actor_kernel(obs_ref, w1_ref, b1_ref, g_ref, beta_ref,
                 w2_ref, b2_ref, w3_ref, b3_ref, out_ref, *, hidden_true):
    # obs tile: (TILE_B, OBS_P) bf16 ; weights bf16 ; biases/affine f32.
    obs = obs_ref[...]

    # ---- trunk: Linear -> LayerNorm -> Tanh ------------------------------- #
    h = jnp.dot(obs, w1_ref[...], preferred_element_type=jnp.float32)
    h = h + b1_ref[...]                                   # (TILE_B, H_P) f32

    # One-pass LayerNorm statistics over the TRUE hidden width. Padded lanes
    # of h are exactly 0 (zero-padded W1 rows/cols + zero-padded b1), so they
    # contribute nothing to either sum; divide by the logical width.
    inv_h = 1.0 / float(hidden_true)
    s = jnp.sum(h, axis=-1, keepdims=True)
    sq = jnp.sum(h * h, axis=-1, keepdims=True)
    mean = s * inv_h
    var = sq * inv_h - mean * mean
    hn = (h - mean) * lax.rsqrt(var + 1e-5)
    # gamma/beta are zero on padded lanes -> padded lanes of hn become 0.
    hn = hn * g_ref[...] + beta_ref[...]
    hn = jnp.tanh(hn)

    # ---- policy: Linear -> ReLU -> Linear -> Tanh ------------------------- #
    p = jnp.dot(hn.astype(jnp.bfloat16), w2_ref[...],
                preferred_element_type=jnp.float32)
    p = jnp.maximum(p + b2_ref[...], 0.0)

    a = jnp.dot(p.astype(jnp.bfloat16), w3_ref[...],
                preferred_element_type=jnp.float32)
    out_ref[...] = jnp.tanh(a + b3_ref[...])              # (TILE_B, A_P) f32


# --------------------------------------------------------------------------- #
# Wrapper
# --------------------------------------------------------------------------- #
def actor_forward(obs, params, obs_dim, action_dim, hidden_dim):
    (w1, b1, gamma, beta, w2, b2, w3, b3) = params
    B = obs.shape[0]

    # Lane-dense padded sizes.
    OBS_P = _round_up(obs_dim, LANE)
    H_P = _round_up(hidden_dim, LANE)
    A_P = _round_up(action_dim, LANE)

    # Batch tiling (pad batch rows with zeros; sliced off at the end).
    TILE_B = min(TILE_B_MAX, _round_up(B, 8))
    B_pad = _round_up(B, TILE_B)

    # Pad + cast operands (layout plumbing, done once per call here).
    obs_p = _pad2(obs, B_pad, OBS_P, jnp.bfloat16)
    w1_p = _pad2(w1, OBS_P, H_P, jnp.bfloat16)
    w2_p = _pad2(w2, H_P, H_P, jnp.bfloat16)
    w3_p = _pad2(w3, H_P, A_P, jnp.bfloat16)
    b1_p = _pad2(b1, 1, H_P)
    g_p = _pad2(gamma, 1, H_P)
    be_p = _pad2(beta, 1, H_P)
    b2_p = _pad2(b2, 1, H_P)
    b3_p = _pad2(b3, 1, A_P)

    grid = (B_pad // TILE_B,)

    # Params get a constant (0, 0) index_map -> VMEM-resident across the grid.
    resident = lambda shape: pl.BlockSpec(shape, lambda i: (0, 0))
    in_specs = [
        pl.BlockSpec((TILE_B, OBS_P), lambda i: (i, 0)),   # obs tile
        resident((OBS_P, H_P)),                            # w1
        resident((1, H_P)),                                # b1
        resident((1, H_P)),                                # gamma
        resident((1, H_P)),                                # beta
        resident((H_P, H_P)),                              # w2
        resident((1, H_P)),                                # b2
        resident((H_P, A_P)),                              # w3
        resident((1, A_P)),                                # b3
    ]
    out_specs = pl.BlockSpec((TILE_B, A_P), lambda i: (i, 0))

    flops = 2 * B_pad * (OBS_P * H_P + H_P * H_P + H_P * A_P)
    transcendentals = B_pad * (H_P + A_P + 1)              # tanh x2 + rsqrt
    bytes_accessed = sum(int(x.size) * x.dtype.itemsize for x in
                         (obs_p, w1_p, b1_p, g_p, be_p, w2_p, b2_p, w3_p, b3_p))
    bytes_accessed += B_pad * A_P * 4

    out = pl.pallas_call(
        functools.partial(actor_kernel, hidden_true=hidden_dim),
        out_shape=jax.ShapeDtypeStruct((B_pad, A_P), jnp.float32),
        grid=grid,
        in_specs=in_specs,
        out_specs=out_specs,
        compiler_params=pltpu.CompilerParams(
            dimension_semantics=("parallel",),      # shard batch over TCs (v7x)
            vmem_limit_bytes=32 * 1024 * 1024,      # fits v5e/v6e/v7x scoped VMEM
        ),
        cost_estimate=pl.CostEstimate(
            flops=flops,
            transcendentals=transcendentals,
            bytes_accessed=bytes_accessed,
        ),
    )(obs_p, w1_p, b1_p, g_p, be_p, w2_p, b2_p, w3_p, b3_p)

    return out[:B, :action_dim]


# --------------------------------------------------------------------------- #
# Params + references
# --------------------------------------------------------------------------- #
def init_params(key, obs_dim, action_dim, hidden_dim):
    """Deterministic synthetic init (scaled normals), torch-style shapes
    already transposed to (in_features, out_features)."""
    ks = jax.random.split(key, 3)
    w1 = jax.random.normal(ks[0], (obs_dim, hidden_dim), jnp.float32) / jnp.sqrt(obs_dim)
    b1 = jnp.zeros((1, hidden_dim), jnp.float32)
    gamma = jnp.ones((1, hidden_dim), jnp.float32)
    beta = jnp.zeros((1, hidden_dim), jnp.float32)
    w2 = jax.random.normal(ks[1], (hidden_dim, hidden_dim), jnp.float32) / jnp.sqrt(hidden_dim)
    b2 = jnp.zeros((1, hidden_dim), jnp.float32)
    w3 = jax.random.normal(ks[2], (hidden_dim, action_dim), jnp.float32) / jnp.sqrt(hidden_dim)
    b3 = jnp.zeros((1, action_dim), jnp.float32)
    return (w1, b1, gamma, beta, w2, b2, w3, b3)


def reference_f32(obs, params):
    """Pure-f32 torch-equivalent reference."""
    (w1, b1, gamma, beta, w2, b2, w3, b3) = params
    h = obs @ w1 + b1
    mean = h.mean(-1, keepdims=True)
    var = ((h - mean) ** 2).mean(-1, keepdims=True)
    h = (h - mean) / jnp.sqrt(var + 1e-5)
    h = jnp.tanh(h * gamma + beta)
    p = jnp.maximum(h @ w2 + b2, 0.0)
    return jnp.tanh(p @ w3 + b3)


def reference_bf16(obs, params):
    """Reference mirroring the kernel's bf16-matmul / f32-accumulate math."""
    (w1, b1, gamma, beta, w2, b2, w3, b3) = params
    bf = jnp.bfloat16
    h = jnp.dot(obs.astype(bf), w1.astype(bf), preferred_element_type=jnp.float32) + b1
    mean = h.mean(-1, keepdims=True)
    var = (h * h).mean(-1, keepdims=True) - mean * mean
    h = (h - mean) * lax.rsqrt(var + 1e-5)
    h = jnp.tanh(h * gamma + beta)
    p = jnp.maximum(
        jnp.dot(h.astype(bf), w2.astype(bf), preferred_element_type=jnp.float32) + b2, 0.0)
    a = jnp.dot(p.astype(bf), w3.astype(bf), preferred_element_type=jnp.float32) + b3
    return jnp.tanh(a)


if __name__ == "__main__":
    key = jax.random.PRNGKey(0)
    B, obs_dim, action_dim, hidden_dim = 8, 24, 6, 32

    k_obs, k_par = jax.random.split(key)
    obs = jax.random.normal(k_obs, (B, obs_dim), jnp.float32)
    params = init_params(k_par, obs_dim, action_dim, hidden_dim)

    out = actor_forward(obs, params, obs_dim, action_dim, hidden_dim)
    out = jax.block_until_ready(out)
    assert out.shape == (B, action_dim)

    # Tight check against a reference with the same bf16-matmul rounding.
    ref_bf = reference_bf16(obs, params)
    assert jnp.allclose(out, ref_bf, atol=2e-3, rtol=2e-3), \
        float(jnp.max(jnp.abs(out - ref_bf)))

    # Loose check against the pure-f32 torch-equivalent forward.
    ref_f32 = reference_f32(obs, params)
    assert jnp.allclose(out, ref_f32, atol=5e-2, rtol=5e-2), \
        float(jnp.max(jnp.abs(out - ref_f32)))

    print("KERNEL_OK")
</pallas_src>

<mosaic_0001>
module attributes {stable_mosaic.version = 11 : i64} {
  func.func @actor_kernel(%arg0: i32, %arg1: memref<8x128xbf16, #tpu.memory_space<vmem>>, %arg2: memref<128x128xbf16, #tpu.memory_space<vmem>>, %arg3: memref<1x128xf32, #tpu.memory_space<vmem>>, %arg4: memref<1x128xf32, #tpu.memory_space<vmem>>, %arg5: memref<1x128xf32, #tpu.memory_space<vmem>>, %arg6: memref<128x128xbf16, #tpu.memory_space<vmem>>, %arg7: memref<1x128xf32, #tpu.memory_space<vmem>>, %arg8: memref<128x128xbf16, #tpu.memory_space<vmem>>, %arg9: memref<1x128xf32, #tpu.memory_space<vmem>>, %arg10: memref<8x128xf32, #tpu.memory_space<vmem>>) attributes {dimension_semantics = [#tpu.dimension_semantics<parallel>], iteration_bounds = array<i64: 1>, scalar_prefetch = 0 : i64, scratch_operands = 0 : i64, tpu.core_type = #tpu.core_type<tc>, window_params = [{transform_indices = @transform_0, window_bounds = array<i64: 8, 128>}, {pipeline_mode = #tpu.pipeline_mode<synchronous>, transform_indices = @transform_1, window_bounds = array<i64: 128, 128>}, {pipeline_mode = #tpu.pipeline_mode<synchronous>, transform_indices = @transform_2, window_bounds = array<i64: 1, 128>}, {pipeline_mode = #tpu.pipeline_mode<synchronous>, transform_indices = @transform_3, window_bounds = array<i64: 1, 128>}, {pipeline_mode = #tpu.pipeline_mode<synchronous>, transform_indices = @transform_4, window_bounds = array<i64: 1, 128>}, {pipeline_mode = #tpu.pipeline_mode<synchronous>, transform_indices = @transform_5, window_bounds = array<i64: 128, 128>}, {pipeline_mode = #tpu.pipeline_mode<synchronous>, transform_indices = @transform_6, window_bounds = array<i64: 1, 128>}, {pipeline_mode = #tpu.pipeline_mode<synchronous>, transform_indices = @transform_7, window_bounds = array<i64: 128, 128>}, {pipeline_mode = #tpu.pipeline_mode<synchronous>, transform_indices = @transform_8, window_bounds = array<i64: 1, 128>}, {transform_indices = @transform_9, window_bounds = array<i64: 8, 128>}]} {
    %c0 = arith.constant 0 : index
    %c0_0 = arith.constant 0 : index
    %0 = vector.load %arg1[%c0, %c0_0] : memref<8x128xbf16, #tpu.memory_space<vmem>>, vector<8x128xbf16>
    %c0_1 = arith.constant 0 : index
    %c0_2 = arith.constant 0 : index
    %1 = vector.load %arg2[%c0_1, %c0_2] : memref<128x128xbf16, #tpu.memory_space<vmem>>, vector<128x128xbf16>
    %cst = arith.constant dense<0.000000e+00> : vector<8x128xf32>
    %2 = tpu.matmul %0, %1, %cst {dimension_numbers = #tpu.dot_dimension_numbers<[1], [0], [0], [1], [0, 0, 1, 1], [], []>} : vector<8x128xbf16>, vector<128x128xbf16>, vector<8x128xf32> -> vector<8x128xf32>
    %c0_3 = arith.constant 0 : index
    %c0_4 = arith.constant 0 : index
    %3 = vector.load %arg3[%c0_3, %c0_4] : memref<1x128xf32, #tpu.memory_space<vmem>>, vector<1x128xf32>
    %4 = vector.broadcast %3 : vector<1x128xf32> to vector<8x128xf32>
    %5 = arith.addf %2, %4 : vector<8x128xf32>
    %cst_5 = arith.constant dense<0.000000e+00> : vector<8xf32>
    %6 = vector.multi_reduction <add>, %5, %cst_5 [1] : vector<8x128xf32> to vector<8xf32>
    %7 = vector.shape_cast %6 : vector<8xf32> to vector<8x1xf32>
    %8 = arith.mulf %5, %5 : vector<8x128xf32>
    %cst_6 = arith.constant dense<0.000000e+00> : vector<8xf32>
    %9 = vector.multi_reduction <add>, %8, %cst_6 [1] : vector<8x128xf32> to vector<8xf32>
    %10 = vector.shape_cast %9 : vector<8xf32> to vector<8x1xf32>
    %cst_7 = arith.constant 3.125000e-02 : f32
    %11 = vector.broadcast %cst_7 : f32 to vector<8x1xf32>
    %12 = arith.mulf %7, %11 : vector<8x1xf32>
    %cst_8 = arith.constant 3.125000e-02 : f32
    %13 = vector.broadcast %cst_8 : f32 to vector<8x1xf32>
    %14 = arith.mulf %10, %13 : vector<8x1xf32>
    %15 = arith.mulf %12, %12 : vector<8x1xf32>
    %16 = arith.subf %14, %15 : vector<8x1xf32>
    %17 = vector.broadcast %12 : vector<8x1xf32> to vector<8x128xf32>
    %18 = arith.subf %5, %17 : vector<8x128xf32>
    %cst_9 = arith.constant 9.99999974E-6 : f32
    %19 = vector.broadcast %cst_9 : f32 to vector<8x1xf32>
    %20 = arith.addf %16, %19 : vector<8x1xf32>
    %21 = math.rsqrt %20 : vector<8x1xf32>
    %22 = vector.broadcast %21 : vector<8x1xf32> to vector<8x128xf32>
    %23 = arith.mulf %18, %22 : vector<8x128xf32>
    %c0_10 = arith.constant 0 : index
    %c0_11 = arith.constant 0 : index
    %24 = vector.load %arg4[%c0_10, %c0_11] : memref<1x128xf32, #tpu.memory_space<vmem>>, vector<1x128xf32>
    %25 = vector.broadcast %24 : vector<1x128xf32> to vector<8x128xf32>
    %26 = arith.mulf %23, %25 : vector<8x128xf32>
    %c0_12 = arith.constant 0 : index
    %c0_13 = arith.constant 0 : index
    %27 = vector.load %arg5[%c0_12, %c0_13] : memref<1x128xf32, #tpu.memory_space<vmem>>, vector<1x128xf32>
    %28 = vector.broadcast %27 : vector<1x128xf32> to vector<8x128xf32>
    %29 = arith.addf %26, %28 : vector<8x128xf32>
    %30 = math.tanh %29 : vector<8x128xf32>
    %31 = arith.truncf %30 : vector<8x128xf32> to vector<8x128xbf16>
    %c0_14 = arith.constant 0 : index
    %c0_15 = arith.constant 0 : index
    %32 = vector.load %arg6[%c0_14, %c0_15] : memref<128x128xbf16, #tpu.memory_space<vmem>>, vector<128x128xbf16>
    %cst_16 = arith.constant dense<0.000000e+00> : vector<8x128xf32>
    %33 = tpu.matmul %31, %32, %cst_16 {dimension_numbers = #tpu.dot_dimension_numbers<[1], [0], [0], [1], [0, 0, 1, 1], [], []>} : vector<8x128xbf16>, vector<128x128xbf16>, vector<8x128xf32> -> vector<8x128xf32>
    %c0_17 = arith.constant 0 : index
    %c0_18 = arith.constant 0 : index
    %34 = vector.load %arg7[%c0_17, %c0_18] : memref<1x128xf32, #tpu.memory_space<vmem>>, vector<1x128xf32>
    %35 = vector.broadcast %34 : vector<1x128xf32> to vector<8x128xf32>
    %36 = arith.addf %33, %35 : vector<8x128xf32>
    %cst_19 = arith.constant 0.000000e+00 : f32
    %37 = vector.broadcast %cst_19 : f32 to vector<8x128xf32>
    %38 = arith.maximumf %36, %37 : vector<8x128xf32>
    %39 = arith.truncf %38 : vector<8x128xf32> to vector<8x128xbf16>
    %c0_20 = arith.constant 0 : index
    %c0_21 = arith.constant 0 : index
    %40 = vector.load %arg8[%c0_20, %c0_21] : memref<128x128xbf16, #tpu.memory_space<vmem>>, vector<128x128xbf16>
    %cst_22 = arith.constant dense<0.000000e+00> : vector<8x128xf32>
    %41 = tpu.matmul %39, %40, %cst_22 {dimension_numbers = #tpu.dot_dimension_numbers<[1], [0], [0], [1], [0, 0, 1, 1], [], []>} : vector<8x128xbf16>, vector<128x128xbf16>, vector<8x128xf32> -> vector<8x128xf32>
    %c0_23 = arith.constant 0 : index
    %c0_24 = arith.constant 0 : index
    %42 = vector.load %arg9[%c0_23, %c0_24] : memref<1x128xf32, #tpu.memory_space<vmem>>, vector<1x128xf32>
    %43 = vector.broadcast %42 : vector<1x128xf32> to vector<8x128xf32>
    %44 = arith.addf %41, %43 : vector<8x128xf32>
    %45 = math.tanh %44 : vector<8x128xf32>
    %c0_25 = arith.constant 0 : index
    %c0_26 = arith.constant 0 : index
    %46 = vector.load %arg10[%c0_25, %c0_26] : memref<8x128xf32, #tpu.memory_space<vmem>>, vector<8x128xf32>
    tpu.vector_store %arg10[%c0_25, %c0_26], %45 {strides = array<i32>} : memref<8x128xf32, #tpu.memory_space<vmem>>, vector<8x128xf32>,
    return
  }
  func.func @transform_0(%arg0: i32) -> (i32, i32) {
    %c0_i32 = arith.constant 0 : i32
    %c0_i32_0 = arith.constant 0 : i32
    return %arg0, %c0_i32 : i32, i32
  }
  func.func @transform_1(%arg0: i32) -> (i32, i32) {
    %c0_i32 = arith.constant 0 : i32
    %c0_i32_0 = arith.constant 0 : i32
    %c0_i32_1 = arith.constant 0 : i32
    return %c0_i32, %c0_i32_0 : i32, i32
  }
  func.func @transform_2(%arg0: i32) -> (i32, i32) {
    %c0_i32 = arith.constant 0 : i32
    %c0_i32_0 = arith.constant 0 : i32
    %c0_i32_1 = arith.constant 0 : i32
    return %c0_i32, %c0_i32_0 : i32, i32
  }
  func.func @transform_3(%arg0: i32) -> (i32, i32) {
    %c0_i32 = arith.constant 0 : i32
    %c0_i32_0 = arith.constant 0 : i32
    %c0_i32_1 = arith.constant 0 : i32
    return %c0_i32, %c0_i32_0 : i32, i32
  }
  func.func @transform_4(%arg0: i32) -> (i32, i32) {
    %c0_i32 = arith.constant 0 : i32
    %c0_i32_0 = arith.constant 0 : i32
    %c0_i32_1 = arith.constant 0 : i32
    return %c0_i32, %c0_i32_0 : i32, i32
  }
  func.func @transform_5(%arg0: i32) -> (i32, i32) {
    %c0_i32 = arith.constant 0 : i32
    %c0_i32_0 = arith.constant 0 : i32
    %c0_i32_1 = arith.constant 0 : i32
    return %c0_i32, %c0_i32_0 : i32, i32
  }
  func.func @transform_6(%arg0: i32) -> (i32, i32) {
    %c0_i32 = arith.constant 0 : i32
    %c0_i32_0 = arith.constant 0 : i32
    %c0_i32_1 = arith.constant 0 : i32
    return %c0_i32, %c0_i32_0 : i32, i32
  }
  func.func @transform_7(%arg0: i32) -> (i32, i32) {
    %c0_i32 = arith.constant 0 : i32
    %c0_i32_0 = arith.constant 0 : i32
    %c0_i32_1 = arith.constant 0 : i32
    return %c0_i32, %c0_i32_0 : i32, i32
  }
  func.func @transform_8(%arg0: i32) -> (i32, i32) {
    %c0_i32 = arith.constant 0 : i32
    %c0_i32_0 = arith.constant 0 : i32
    %c0_i32_1 = arith.constant 0 : i32
    return %c0_i32, %c0_i32_0 : i32, i32
  }
  func.func @transform_9(%arg0: i32) -> (i32, i32) {
    %c0_i32 = arith.constant 0 : i32
    %c0_i32_0 = arith.constant 0 : i32
    return %arg0, %c0_i32 : i32, i32
  }
}

</mosaic_0001>

<llo_original>
// kernel: tpu_custom_call.1
$region0: #{tpu_custom_call.1}
  #allocation0 [shape = 'u32[]', space=smem, size = 0x4, offset = 0x4, fixed_abs, tag = 'smem constant byte address 0x4 - core index']
  #allocation1 [shape = 'u32[144,128]{1,0:T(1,128)}', space=vmem, size = 0x12000, scoped, tag = 'internal scratch']
  %s0 = inlined_call_operand.hbm [shape: bf16[8,128], index: 0, kind: input, shape index: {}]
  %s1 = inlined_call_operand.hbm [shape: bf16[128,128], index: 1, kind: input, shape index: {}]
  %s2 = inlined_call_operand.vmem [shape: f32[1,128], index: 2, kind: input, shape index: {}]
  %s3 = inlined_call_operand.vmem [shape: f32[1,128], index: 3, kind: input, shape index: {}]
  %s4 = inlined_call_operand.vmem [shape: f32[1,128], index: 4, kind: input, shape index: {}]
  %s5 = inlined_call_operand.hbm [shape: bf16[128,128], index: 5, kind: input, shape index: {}]
  %s6 = inlined_call_operand.vmem [shape: f32[1,128], index: 6, kind: input, shape index: {}]
  %s7 = inlined_call_operand.hbm [shape: bf16[128,128], index: 7, kind: input, shape index: {}]
  %s8 = inlined_call_operand.vmem [shape: f32[1,128], index: 8, kind: input, shape index: {}]
  %s9 = inlined_call_operand.hbm [shape: f32[8,128], index: 9, kind: output, shape index: {}]
  %s10 = sld [smem:[#allocation0]]
  $region62: #{tpu_custom_call.1} parent=0
    _
  %s12 = ssub.s32 1, %s10
  %s13 = scalar_select 0, %s12, %s10
  $region1: #{tpu_custom_call.1} parent=0
    #allocation2 [shape = 'u8[2048]{0}', space=vmem, size = 0x800, scoped, tag = 'input window, operand 0, single buffered']
    #allocation3 [shape = 's32[1]{0}', space=sflag, size = 0x4, scoped, tag = 'scoped memory for tpu_custom_call.1']
    #allocation4 [shape = 's32[1]{0}', space=sflag, size = 0x4, scoped, tag = 'scoped memory for tpu_custom_call.1']
    #allocation5 [shape = 'u8[32768]{0}', space=vmem, size = 0x8000, scoped, tag = 'input window, operand 1, single buffered']
    #allocation6 [shape = 's32[1]{0}', space=sflag, size = 0x4, scoped, tag = 'scoped memory for tpu_custom_call.1']
    #allocation7 [shape = 'u8[32768]{0}', space=vmem, size = 0x8000, scoped, tag = 'input window, operand 5, single buffered']
    #allocation8 [shape = 'u8[32768]{0}', space=vmem, size = 0x8000, scoped, tag = 'input window, operand 7, single buffered']
    #allocation9 [shape = 's32[1]{0}', space=sflag, size = 0x4, scoped, tag = 'scoped memory for tpu_custom_call.1']
    #allocation10 [shape = 'u8[4096]{0}', space=vmem, size = 0x1000, scoped, tag = 'output window, operand 0, single buffered']
    %14 = vsyncpa [#allocation3], 0
    %15 = vsyncpa [#allocation6], 0
    %16 = vsyncpa [#allocation9], 0
    %17 = vsyncpa [#allocation4], 0
    // Predicated region
    $region2: #{tpu_custom_call.1} parent=1 // pred_check
      _
    $region3: #{tpu_custom_call.1} parent=1 // pred_check_branch
      %19 = sbr.rel (0) target = $region5
    $region4: #{tpu_custom_call.1} parent=1 // pred_region
      %s21 = ssub.s32 64, 64
      %22 = vsyncadd [#allocation3], %s21
      %s24 = sshll.u32 [#allocation2], 4
      %s25 = int_to_ptr.vmem [resolvable:$true] %s24
      %27 = dma.hbm_to_vmem [thread:$0]  %s0, 64, %s25, [#allocation3]
    $region5: #{tpu_custom_call.1} parent=1 // pred_fallthru
      _
    // Predicated region
    $region6: #{tpu_custom_call.1} parent=1 // pred_check
      _
    $region7: #{tpu_custom_call.1} parent=1 // pred_check_branch
      %29 = sbr.rel (0) target = $region9
    $region8: #{tpu_custom_call.1} parent=1 // pred_region
      %s31 = ssub.s32 1024, 1024
      %32 = vsyncadd [#allocation6], %s31
      %s33 = sshll.u32 [#allocation5], 4
      %s34 = int_to_ptr.vmem [resolvable:$true] %s33
      %39 = dma.hbm_to_vmem [thread:$0]  %s1, 1024, %s34, [#allocation6], 64, 64, 4
    $region9: #{tpu_custom_call.1} parent=1 // pred_fallthru
      _
    // Predicated region
    $region10: #{tpu_custom_call.1} parent=1 // pred_check
      _
    $region11: #{tpu_custom_call.1} parent=1 // pred_check_branch
      %41 = sbr.rel (0) target = $region13
    $region12: #{tpu_custom_call.1} parent=1 // pred_region
      _
    $region13: #{tpu_custom_call.1} parent=1 // pred_fallthru
      _
    // Predicated region
    $region14: #{tpu_custom_call.1} parent=1 // pred_check
      _
    $region15: #{tpu_custom_call.1} parent=1 // pred_check_branch
      %43 = sbr.rel (0) target = $region17
    $region16: #{tpu_custom_call.1} parent=1 // pred_region
      _
    $region17: #{tpu_custom_call.1} parent=1 // pred_fallthru
      _
    // Predicated region
    $region18: #{tpu_custom_call.1} parent=1 // pred_check
      _
    $region19: #{tpu_custom_call.1} parent=1 // pred_check_branch
      %45 = sbr.rel (0) target = $region21
    $region20: #{tpu_custom_call.1} parent=1 // pred_region
      _
    $region21: #{tpu_custom_call.1} parent=1 // pred_fallthru
      _
    // Predicated region
    $region22: #{tpu_custom_call.1} parent=1 // pred_check
      _
    $region23: #{tpu_custom_call.1} parent=1 // pred_check_branch
      %47 = sbr.rel (0) target = $region25
    $region24: #{tpu_custom_call.1} parent=1 // pred_region
      %s49 = ssub.s32 1024, 1024
      %50 = vsyncadd [#allocation6], %s49
      %s51 = sshll.u32 [#allocation7], 4
      %s52 = int_to_ptr.vmem [resolvable:$true] %s51
      %57 = dma.hbm_to_vmem [thread:$0]  %s5, 1024, %s52, [#allocation6], 64, 64, 4
    $region25: #{tpu_custom_call.1} parent=1 // pred_fallthru
      _
    // Predicated region
    $region26: #{tpu_custom_call.1} parent=1 // pred_check
      _
    $region27: #{tpu_custom_call.1} parent=1 // pred_check_branch
      %59 = sbr.rel (0) target = $region29
    $region28: #{tpu_custom_call.1} parent=1 // pred_region
      _
    $region29: #{tpu_custom_call.1} parent=1 // pred_fallthru
      _
    // Predicated region
    $region30: #{tpu_custom_call.1} parent=1 // pred_check
      _
    $region31: #{tpu_custom_call.1} parent=1 // pred_check_branch
      %61 = sbr.rel (0) target = $region33
    $region32: #{tpu_custom_call.1} parent=1 // pred_region
      %s63 = ssub.s32 1024, 1024
      %64 = vsyncadd [#allocation9], %s63
      %s65 = sshll.u32 [#allocation8], 4
      %s66 = int_to_ptr.vmem [resolvable:$true] %s65
      %71 = dma.hbm_to_vmem [thread:$0]  %s7, 1024, %s66, [#allocation9], 64, 64, 4
    $region33: #{tpu_custom_call.1} parent=1 // pred_fallthru
      _
    // Predicated region
    $region34: #{tpu_custom_call.1} parent=1 // pred_check
      _
    $region35: #{tpu_custom_call.1} parent=1 // pred_check_branch
      %73 = sbr.rel (0) target = $region37
    $region36: #{tpu_custom_call.1} parent=1 // pred_region
      _
    $region37: #{tpu_custom_call.1} parent=1 // pred_fallthru
      _
    // Predicated region
    $region38: #{tpu_custom_call.1} parent=1 // pred_check
      _
    $region39: #{tpu_custom_call.1} parent=1 // pred_check_branch
      %75 = sbr.rel (0) target = $region41
    $region40: #{tpu_custom_call.1} parent=1 // pred_region
      %76 = dma.done [#allocation3], 64
    $region41: #{tpu_custom_call.1} parent=1 // pred_fallthru
      _
    // Predicated region
    $region42: #{tpu_custom_call.1} parent=1 // pred_check
      _
    $region43: #{tpu_custom_call.1} parent=1 // pred_check_branch
      %78 = sbr.rel (0) target = $region45
    $region44: #{tpu_custom_call.1} parent=1 // pred_region
      %79 = dma.done [#allocation6], 1024
    $region45: #{tpu_custom_call.1} parent=1 // pred_fallthru
      _
    // Predicated region
    $region46: #{tpu_custom_call.1} parent=1 // pred_check
      _
    $region47: #{tpu_custom_call.1} parent=1 // pred_check_branch
      %81 = sbr.rel (0) target = $region49
    $region48: #{tpu_custom_call.1} parent=1 // pred_region
      %82 = dma.done [#allocation6], 1024
    $region49: #{tpu_custom_call.1} parent=1 // pred_fallthru
      _
    // Predicated region
    $region50: #{tpu_custom_call.1} parent=1 // pred_check
      _
    $region51: #{tpu_custom_call.1} parent=1 // pred_check_branch
      %84 = sbr.rel (0) target = $region53
    $region52: #{tpu_custom_call.1} parent=1 // pred_region
      %85 = dma.done [#allocation9], 1024
    $region53: #{tpu_custom_call.1} parent=1 // pred_fallthru
      _
    %v87 = vld [vmem:[#allocation2] sm:$0xf]
    %v88 = vld [vmem:[#allocation5] sm:$0xf]
    %v89 = vld [vmem:[#allocation5 + $0x4] sm:$0xf]
    %v90 = vld [vmem:[#allocation5 + $0x8] sm:$0xf]
    %v91 = vld [vmem:[#allocation5 + $0xc] sm:$0xf]
    %v92 = vld [vmem:[#allocation5 + $0x10] sm:$0xf]
    %v93 = vld [vmem:[#allocation5 + $0x14] sm:$0xf]
    %v94 = vld [vmem:[#allocation5 + $0x18] sm:$0xf]
    %v95 = vld [vmem:[#allocation5 + $0x1c] sm:$0xf]
    %v96 = vld [vmem:[#allocation5 + $0x20] sm:$0xf]
    %v97 = vld [vmem:[#allocation5 + $0x24] sm:$0xf]
    %v98 = vld [vmem:[#allocation5 + $0x28] sm:$0xf]
    %v99 = vld [vmem:[#allocation5 + $0x2c] sm:$0xf]
    %v100 = vld [vmem:[#allocation5 + $0x30] sm:$0xf]
    %v101 = vld [vmem:[#allocation5 + $0x34] sm:$0xf]
    %v102 = vld [vmem:[#allocation5 + $0x38] sm:$0xf]
    %v103 = vld [vmem:[#allocation5 + $0x3c] sm:$0xf]
    %v104 = vld [vmem:[%s2] sm:$0x1]
    %v106 = vlaneseq
    %v107 = vshrl.u32 %v106, 7
    %v108 = vsub.s32 0, %v107
    %v109 = vrot.slane %v104, %v108
    %v127 = vunpack.c.l.b16 %v88
    %v128 = vunpack.c.l.b16 %v89
    %v129 = vunpack.c.l.b16 %v90
    %v130 = vunpack.c.l.b16 %v91
    %v131 = vunpack.c.l.b16 %v92
    %v132 = vunpack.c.l.b16 %v93
    %v133 = vunpack.c.l.b16 %v94
    %v134 = vunpack.c.l.b16 %v95
    %v135 = vunpack.c.l.b16 %v96
    %v136 = vunpack.c.l.b16 %v97
    %v137 = vunpack.c.l.b16 %v98
    %v138 = vunpack.c.l.b16 %v99
    %v139 = vunpack.c.l.b16 %v100
    %v140 = vunpack.c.l.b16 %v101
    %v141 = vunpack.c.l.b16 %v102
    %v142 = vunpack.c.l.b16 %v103
    %v143 = vpack.c.b16 %v128, %v127
    %v144 = vpack.c.b16 %v130, %v129
    %v145 = vpack.c.b16 %v132, %v131
    %v146 = vpack.c.b16 %v134, %v133
    %v147 = vpack.c.b16 %v136, %v135
    %v148 = vpack.c.b16 %v138, %v137
    %v149 = vpack.c.b16 %v140, %v139
    %v150 = vpack.c.b16 %v142, %v141
    %159 = vmatprep.subr.bf16.mxu0 0
    %160 = vmatpush1.bf16.msra.mxu0 %v143
    %161 = vmatprep.subr.bf16.mxu0 0
    %162 = vmatpush1.bf16.msra.mxu0 %v144
    %163 = vmatprep.subr.bf16.mxu0 0
    %164 = vmatpush1.bf16.msra.mxu0 %v145
    %165 = vmatprep.subr.bf16.mxu0 0
    %166 = vmatpush1.bf16.msra.mxu0 %v146
    %167 = vmatprep.subr.bf16.mxu0 0
    %168 = vmatpush1.bf16.msra.mxu0 %v147
    %169 = vmatprep.subr.bf16.mxu0 0
    %170 = vmatpush1.bf16.msra.mxu0 %v148
    %171 = vmatprep.subr.bf16.mxu0 0
    %172 = vmatpush1.bf16.msra.mxu0 %v149
    %173 = vmatprep.subr.bf16.mxu0 0
    %174 = vmatpush1.bf16.msra.mxu0 %v150
    %175 = vmatprep.subr.bf16.mxu0 0
    %176 = vmatpush1.bf16.msra.mxu0 0
    %177 = vmatprep.subr.bf16.mxu0 0
    %178 = vmatpush1.bf16.msra.mxu0 0
    %179 = vmatprep.subr.bf16.mxu0 0
    %180 = vmatpush1.bf16.msra.mxu0 0
    %181 = vmatprep.subr.bf16.mxu0 0
    %182 = vmatpush1.bf16.msra.mxu0 0
    %183 = vmatprep.subr.bf16.mxu0 0
    %184 = vmatpush1.bf16.msra.mxu0 0
    %185 = vmatprep.subr.bf16.mxu0 0
    %186 = vmatpush1.bf16.msra.mxu0 0
    %187 = vmatprep.subr.bf16.mxu0 0
    %188 = vmatpush1.bf16.msra.mxu0 0
    %189 = vmatprep.subr.bf16.mxu0 0
    %190 = vmatpush1.bf16.msra.mxu0 0
    %191 = vmatprep.mubr.bf16.mxu0 0
    %192 = vmatmul.mubr.bf16.gmra.mrb[0].mxu0 %v87
    %v193 = vpop.f32.mrb[0].mxu0
    %v194 = vadd.f32 %v109, %v193
    %v195 = vpop.f32.mrb[0].mxu0
    %v196 = vpop.f32.mrb[0].mxu0
    %v197 = vpop.f32.mrb[0].mxu0
    %198 = vdwg.mxu0
    %199 = vadd.xlane.f32.xlu0 %v194
    %v200 = vpop.xlane.xlu0 %199
    %v201 = vmul.f32 %v194, %v194
    %202 = vadd.xlane.f32.xlu0 %v201
    %v203 = vpop.xlane.xlu0 %202
    %v204 = vmul.f32 %v200, 0.03125
    %v205 = vmul.f32 %v203, 0.03125
    %v206 = vmul.f32 %v204, %v204
    %v207 = vsub.f32 %v205, %v206
    %v208 = vsub.f32 %v194, %v204
    %v209 = vadd.f32 %v207, 1e-05
    %v210 = vrsqrt.pop %v209
    %v211 = vmul.f32 %v208, %v210
    %v212 = vld [vmem:[%s3] sm:$0x1]
    %v214 = vlaneseq
    %v215 = vshrl.u32 %v214, 7
    %v216 = vsub.s32 0, %v215
    %v217 = vrot.slane %v212, %v216
    %v219 = vmul.f32 %v211, %v217
    %v220 = vld [vmem:[%s4] sm:$0x1]
    %v222 = vlaneseq
    %v223 = vshrl.u32 %v222, 7
    %v224 = vsub.s32 0, %v223
    %v225 = vrot.slane %v220, %v224
    %v227 = vadd.f32 %v219, %v225
    %v228 = vtanh.pop %v227
    %v229 = vpack.c.bf16 %v228, %v228
    %v230 = vld [vmem:[#allocation7] sm:$0xf]
    %v231 = vld [vmem:[#allocation7 + $0x4] sm:$0xf]
    %v232 = vld [vmem:[#allocation7 + $0x8] sm:$0xf]
    %v233 = vld [vmem:[#allocation7 + $0xc] sm:$0xf]
    %v234 = vld [vmem:[#allocation7 + $0x10] sm:$0xf]
    %v235 = vld [vmem:[#allocation7 + $0x14] sm:$0xf]
    %v236 = vld [vmem:[#allocation7 + $0x18] sm:$0xf]
    %v237 = vld [vmem:[#allocation7 + $0x1c] sm:$0xf]
    %v238 = vld [vmem:[#allocation7 + $0x20] sm:$0xf]
    %v239 = vld [vmem:[#allocation7 + $0x24] sm:$0xf]
    %v240 = vld [vmem:[#allocation7 + $0x28] sm:$0xf]
    %v241 = vld [vmem:[#allocation7 + $0x2c] sm:$0xf]
    %v242 = vld [vmem:[#allocation7 + $0x30] sm:$0xf]
    %v243 = vld [vmem:[#allocation7 + $0x34] sm:$0xf]
    %v244 = vld [vmem:[#allocation7 + $0x38] sm:$0xf]
    %v245 = vld [vmem:[#allocation7 + $0x3c] sm:$0xf]
    %v246 = vld [vmem:[%s6] sm:$0x1]
    %v248 = vlaneseq
    %v249 = vshrl.u32 %v248, 7
    %v250 = vsub.s32 0, %v249
    %v251 = vrot.slane %v246, %v250
    %v269 = vunpack.c.l.b16 %v230
    %v270 = vunpack.c.l.b16 %v231
    %v271 = vunpack.c.l.b16 %v232
    %v272 = vunpack.c.l.b16 %v233
    %v273 = vunpack.c.l.b16 %v234
    %v274 = vunpack.c.l.b16 %v235
    %v275 = vunpack.c.l.b16 %v236
    %v276 = vunpack.c.l.b16 %v237
    %v277 = vunpack.c.l.b16 %v238
    %v278 = vunpack.c.l.b16 %v239
    %v279 = vunpack.c.l.b16 %v240
    %v280 = vunpack.c.l.b16 %v241
    %v281 = vunpack.c.l.b16 %v242
    %v282 = vunpack.c.l.b16 %v243
    %v283 = vunpack.c.l.b16 %v244
    %v284 = vunpack.c.l.b16 %v245
    %v285 = vpack.c.b16 %v270, %v269
    %v286 = vpack.c.b16 %v272, %v271
    %v287 = vpack.c.b16 %v274, %v273
    %v288 = vpack.c.b16 %v276, %v275
    %v289 = vpack.c.b16 %v278, %v277
    %v290 = vpack.c.b16 %v280, %v279
    %v291 = vpack.c.b16 %v282, %v281
    %v292 = vpack.c.b16 %v284, %v283
    %301 = vmatprep.subr.bf16.mxu0 0
    %302 = vmatpush1.bf16.msra.mxu0 %v285
    %303 = vmatprep.subr.bf16.mxu0 0
    %304 = vmatpush1.bf16.msra.mxu0 %v286
    %305 = vmatprep.subr.bf16.mxu0 0
    %306 = vmatpush1.bf16.msra.mxu0 %v287
    %307 = vmatprep.subr.bf16.mxu0 0
    %308 = vmatpush1.bf16.msra.mxu0 %v288
    %309 = vmatprep.subr.bf16.mxu0 0
    %310 = vmatpush1.bf16.msra.mxu0 %v289
    %311 = vmatprep.subr.bf16.mxu0 0
    %312 = vmatpush1.bf16.msra.mxu0 %v290
    %313 = vmatprep.subr.bf16.mxu0 0
    %314 = vmatpush1.bf16.msra.mxu0 %v291
    %315 = vmatprep.subr.bf16.mxu0 0
    %316 = vmatpush1.bf16.msra.mxu0 %v292
    %317 = vmatprep.subr.bf16.mxu0 0
    %318 = vmatpush1.bf16.msra.mxu0 0
    %319 = vmatprep.subr.bf16.mxu0 0
    %320 = vmatpush1.bf16.msra.mxu0 0
    %321 = vmatprep.subr.bf16.mxu0 0
    %322 = vmatpush1.bf16.msra.mxu0 0
    %323 = vmatprep.subr.bf16.mxu0 0
    %324 = vmatpush1.bf16.msra.mxu0 0
    %325 = vmatprep.subr.bf16.mxu0 0
    %326 = vmatpush1.bf16.msra.mxu0 0
    %327 = vmatprep.subr.bf16.mxu0 0
    %328 = vmatpush1.bf16.msra.mxu0 0
    %329 = vmatprep.subr.bf16.mxu0 0
    %330 = vmatpush1.bf16.msra.mxu0 0
    %331 = vmatprep.subr.bf16.mxu0 0
    %332 = vmatpush1.bf16.msra.mxu0 0
    %333 = vmatprep.mubr.bf16.mxu0 0
    %334 = vmatmul.mubr.bf16.gmra.mrb[0].mxu0 %v229
    %v335 = vpop.f32.mrb[0].mxu0
    %v336 = vadd.f32 %v251, %v335
    %v337 = vpop.f32.mrb[0].mxu0
    %v338 = vpop.f32.mrb[0].mxu0
    %v339 = vpop.f32.mrb[0].mxu0
    %340 = vdwg.mxu0
    %v341 = vmax.f32 %v336, 0.0
    %v342 = vpack.c.bf16 %v341, %v341
    %v343 = vld [vmem:[#allocation8] sm:$0xf]
    %v344 = vld [vmem:[#allocation8 + $0x4] sm:$0xf]
    %v345 = vld [vmem:[#allocation8 + $0x8] sm:$0xf]
    %v346 = vld [vmem:[#allocation8 + $0xc] sm:$0xf]
    %v347 = vld [vmem:[#allocation8 + $0x10] sm:$0xf]
    %v348 = vld [vmem:[#allocation8 + $0x14] sm:$0xf]
    %v349 = vld [vmem:[#allocation8 + $0x18] sm:$0xf]
    %v350 = vld [vmem:[#allocation8 + $0x1c] sm:$0xf]
    %v351 = vld [vmem:[#allocation8 + $0x20] sm:$0xf]
    %v352 = vld [vmem:[#allocation8 + $0x24] sm:$0xf]
    %v353 = vld [vmem:[#allocation8 + $0x28] sm:$0xf]
    %v354 = vld [vmem:[#allocation8 + $0x2c] sm:$0xf]
    %v355 = vld [vmem:[#allocation8 + $0x30] sm:$0xf]
    %v356 = vld [vmem:[#allocation8 + $0x34] sm:$0xf]
    %v357 = vld [vmem:[#allocation8 + $0x38] sm:$0xf]
    %v358 = vld [vmem:[#allocation8 + $0x3c] sm:$0xf]
    %v359 = vld [vmem:[%s8] sm:$0x1]
    %v361 = vlaneseq
    %v362 = vshrl.u32 %v361, 7
    %v363 = vsub.s32 0, %v362
    %v364 = vrot.slane %v359, %v363
    %v382 = vunpack.c.l.b16 %v343
    %v383 = vunpack.c.l.b16 %v344
    %v384 = vunpack.c.l.b16 %v345
    %v385 = vunpack.c.l.b16 %v346
    %v386 = vunpack.c.l.b16 %v347
    %v387 = vunpack.c.l.b16 %v348
    %v388 = vunpack.c.l.b16 %v349
    %v389 = vunpack.c.l.b16 %v350
    %v390 = vunpack.c.l.b16 %v351
    %v391 = vunpack.c.l.b16 %v352
    %v392 = vunpack.c.l.b16 %v353
    %v393 = vunpack.c.l.b16 %v354
    %v394 = vunpack.c.l.b16 %v355
    %v395 = vunpack.c.l.b16 %v356
    %v396 = vunpack.c.l.b16 %v357
    %v397 = vunpack.c.l.b16 %v358
    %v398 = vpack.c.b16 %v383, %v382
    %v399 = vpack.c.b16 %v385, %v384
    %v400 = vpack.c.b16 %v387, %v386
    %v401 = vpack.c.b16 %v389, %v388
    %v402 = vpack.c.b16 %v391, %v390
    %v403 = vpack.c.b16 %v393, %v392
    %v404 = vpack.c.b16 %v395, %v394
    %v405 = vpack.c.b16 %v397, %v396
    %414 = vmatprep.subr.bf16.mxu0 0
    %415 = vmatpush1.bf16.msra.mxu0 %v398
    %416 = vmatprep.subr.bf16.mxu0 0
    %417 = vmatpush1.bf16.msra.mxu0 %v399
    %418 = vmatprep.subr.bf16.mxu0 0
    %419 = vmatpush1.bf16.msra.mxu0 %v400
    %420 = vmatprep.subr.bf16.mxu0 0
    %421 = vmatpush1.bf16.msra.mxu0 %v401
    %422 = vmatprep.subr.bf16.mxu0 0
    %423 = vmatpush1.bf16.msra.mxu0 %v402
    %424 = vmatprep.subr.bf16.mxu0 0
    %425 = vmatpush1.bf16.msra.mxu0 %v403
    %426 = vmatprep.subr.bf16.mxu0 0
    %427 = vmatpush1.bf16.msra.mxu0 %v404
    %428 = vmatprep.subr.bf16.mxu0 0
    %429 = vmatpush1.bf16.msra.mxu0 %v405
    %430 = vmatprep.subr.bf16.mxu0 0
    %431 = vmatpush1.bf16.msra.mxu0 0
    %432 = vmatprep.subr.bf16.mxu0 0
    %433 = vmatpush1.bf16.msra.mxu0 0
    %434 = vmatprep.subr.bf16.mxu0 0
    %435 = vmatpush1.bf16.msra.mxu0 0
    %436 = vmatprep.subr.bf16.mxu0 0
    %437 = vmatpush1.bf16.msra.mxu0 0
    %438 = vmatprep.subr.bf16.mxu0 0
    %439 = vmatpush1.bf16.msra.mxu0 0
    %440 = vmatprep.subr.bf16.mxu0 0
    %441 = vmatpush1.bf16.msra.mxu0 0
    %442 = vmatprep.subr.bf16.mxu0 0
    %443 = vmatpush1.bf16.msra.mxu0 0
    %444 = vmatprep.subr.bf16.mxu0 0
    %445 = vmatpush1.bf16.msra.mxu0 0
    %446 = vmatprep.mubr.bf16.mxu0 0
    %447 = vmatmul.mubr.bf16.gmra.mrb[0].mxu0 %v342
    %v448 = vpop.f32.mrb[0].mxu0
    %v449 = vadd.f32 %v364, %v448
    %v450 = vpop.f32.mrb[0].mxu0
    %v451 = vpop.f32.mrb[0].mxu0
    %v452 = vpop.f32.mrb[0].mxu0
    %453 = vdwg.mxu0
    %v454 = vtanh.pop %v449
    %455 = vst [vmem:[#allocation10] sm:$0xff] %v454
    // Predicated region
    $region54: #{tpu_custom_call.1} parent=1 // pred_check
      _
    $region55: #{tpu_custom_call.1} parent=1 // pred_check_branch
      %457 = sbr.rel (0) target = $region57
    $region56: #{tpu_custom_call.1} parent=1 // pred_region
      %s459 = ssub.s32 128, 128
      %460 = vsyncadd [#allocation4], %s459
      %s462 = sshll.u32 [#allocation10], 4
      %s463 = int_to_ptr.vmem [resolvable:$true] %s462
      %465 = dma.vmem_to_hbm [thread:$0]  %s463, 128, %s9, [#allocation4]
    $region57: #{tpu_custom_call.1} parent=1 // pred_fallthru
      _
    // Predicated region
    $region58: #{tpu_custom_call.1} parent=1 // pred_check
      _
    $region59: #{tpu_custom_call.1} parent=1 // pred_check_branch
      %467 = sbr.rel (0) target = $region61
    $region60: #{tpu_custom_call.1} parent=1 // pred_region
      %468 = dma.done [#allocation4], 128
    $region61: #{tpu_custom_call.1} parent=1 // pred_fallthru
      _
    %469 = vsyncpa [#allocation3], 1
    %470 = vsyncpa [#allocation6], 1
    %471 = vsyncpa [#allocation9], 1
    %472 = vsyncpa [#allocation4], 1

</llo_original>
